<compile_context>
chip_gen: v6e
topology: v6e:2x2x1
jax: 0.10.0
libtpu: 0.0.40
codegen_flags: <defaults>
</compile_context>

<pallas_src>
import jax
import jax.numpy as jnp
from jax.experimental import pallas as pl
from jax.experimental.pallas import tpu as pltpu


def _round_up(x, m):
    return ((x + m - 1) // m) * m


# ----------------------------------------------------------------------------
# Stage 1 kernel: per-node MLPs, run ONCE over all nodes (hoisted out of the
# per-edge loop).  Everything in transposed layout: hidden on sublanes, nodes
# on lanes.  Torch Linear layout: W is (out, in), bias kept as a column.
# Dropout(0.2) is an inference-mode identity.
# ----------------------------------------------------------------------------
def node_mlp_kernel(
    zu_ref, zr_ref,                          # (H, NU_pad), (H, NR_pad)
    w1u_ref, b1u_ref, w2u_ref, b2u_ref,      # user MLP
    w1r_ref, b1r_ref, w2r_ref, b2r_ref,      # restaurant MLP
    uo_ref, ro_ref,                          # (H, NU_pad), (H, NR_pad) transformed tables
):
    f32 = jnp.float32
    # user branch: Linear(H->2H) + ReLU + (Dropout = identity at eval) + Linear(2H->H)
    hu = jnp.maximum(
        jnp.dot(w1u_ref[...], zu_ref[...], preferred_element_type=f32) + b1u_ref[...], 0.0)
    uo_ref[...] = jnp.dot(w2u_ref[...], hu, preferred_element_type=f32) + b2u_ref[...]
    # restaurant branch
    hr = jnp.maximum(
        jnp.dot(w1r_ref[...], zr_ref[...], preferred_element_type=f32) + b1r_ref[...], 0.0)
    ro_ref[...] = jnp.dot(w2r_ref[...], hr, preferred_element_type=f32) + b2r_ref[...]


# ----------------------------------------------------------------------------
# Stage 2 kernel: per-edge scores.  Only an exact one-hot MXU gather from the
# VMEM-resident transformed tables, an elementwise multiply, and a sublane
# reduction remain in the hot loop.
# ----------------------------------------------------------------------------
def edge_score_kernel(uidx_ref, ridx_ref, uo_ref, ro_ref, out_ref):
    f32 = jnp.float32
    nu = uo_ref.shape[1]
    nr = ro_ref.shape[1]
    te = uidx_ref.shape[1]

    # Exact one-hot gather via MXU matmul (exactly one 1.0 per column -> the
    # gathered rows are bit-exact).  Iota is loop-invariant; reuse it for both
    # branches when the padded node counts match.
    iota_u = jax.lax.broadcasted_iota(jnp.int32, (nu, te), 0)
    iota_r = iota_u if nr == nu else jax.lax.broadcasted_iota(jnp.int32, (nr, te), 0)
    u_oh = (uidx_ref[...] == iota_u).astype(f32)                    # (NU_pad, TE)
    r_oh = (ridx_ref[...] == iota_r).astype(f32)                    # (NR_pad, TE)

    u = jnp.dot(uo_ref[...], u_oh, preferred_element_type=f32)      # (H, TE)
    r = jnp.dot(ro_ref[...], r_oh, preferred_element_type=f32)      # (H, TE)

    # (user_lin(u) * restaurant_lin(r)).sum(dim=-1): hidden is on sublanes, so
    # the reduction lands directly in the lane-dense (1, TE) output layout.
    out_ref[...] = jnp.sum(u * r, axis=0, keepdims=True)


def edge_decoder_improved(z_user, z_rest, edge_label_index, params, *, tile_e=1024):
    """params (torch layout): w1* (2H, H), b1* (2H, 1), w2* (H, 2H), b2* (H, 1)."""
    f32 = jnp.float32
    row = edge_label_index[0].astype(jnp.int32)
    col = edge_label_index[1].astype(jnp.int32)
    E = int(row.shape[0])
    H = int(z_user.shape[1])
    H2 = int(params["w1u"].shape[0])

    # ---------------- Stage 1: hoisted per-node MLPs (runs once). ----------------
    def pad_and_transpose(z):
        n = int(z.shape[0])
        n_pad = _round_up(max(n, 1), 128)
        return jnp.pad(z.astype(f32), ((0, n_pad - n), (0, 0))).T   # (H, n_pad)

    zu_t = pad_and_transpose(z_user)          # (H, NU_pad)
    zr_t = pad_and_transpose(z_rest)          # (H, NR_pad)
    nu_pad = int(zu_t.shape[1])
    nr_pad = int(zr_t.shape[1])

    nspec = lambda shape: pl.BlockSpec(shape, lambda i: (0, 0))
    uo_t, ro_t = pl.pallas_call(
        node_mlp_kernel,
        out_shape=(jax.ShapeDtypeStruct((H, nu_pad), f32),
                   jax.ShapeDtypeStruct((H, nr_pad), f32)),
        grid_spec=pltpu.PrefetchScalarGridSpec(
            num_scalar_prefetch=0,
            grid=(1,),
            in_specs=[
                nspec((H, nu_pad)), nspec((H, nr_pad)),
                nspec((H2, H)), nspec((H2, 1)), nspec((H, H2)), nspec((H, 1)),
                nspec((H2, H)), nspec((H2, 1)), nspec((H, H2)), nspec((H, 1)),
            ],
            out_specs=(nspec((H, nu_pad)), nspec((H, nr_pad))),
        ),
    )(
        zu_t, zr_t,
        params["w1u"], params["b1u"], params["w2u"], params["b2u"],
        params["w1r"], params["b1r"], params["w2r"], params["b2r"],
    )

    # ---------------- Stage 2: per-edge gather + multiply + reduce. ----------------
    # Edge tile: large (amortizes ~0.35us/step overhead, fills the MXU N dim),
    # multiple of 128 (lane-dense), capped so the (n_pad, TE) one-hot
    # intermediates stay within an explicit VMEM budget (v7x has only 64 MiB).
    tile_e = max(128, min(_round_up(int(tile_e), 128), _round_up(E, 128)))
    onehot_budget = 16 * 1024 * 1024
    max_te = max(128, ((onehot_budget // ((nu_pad + nr_pad) * 4)) // 128) * 128)
    tile_e = min(tile_e, max_te)

    num_tiles = pl.cdiv(E, tile_e)
    e_pad = num_tiles * tile_e
    # Padded edges reuse node index 0: they do real (wasted) compute and their
    # scores are sliced off below.
    row_p = jnp.pad(row, (0, e_pad - E))[None, :]   # (1, E_pad)
    col_p = jnp.pad(col, (0, e_pad - E))[None, :]   # (1, E_pad)

    # Explicit VMEM working-set estimate: one-hot intermediates + gathered
    # activations + resident transformed tables (double-buffered) + edge
    # index / score streams (double-buffered).
    vmem_needed = (
        (nu_pad + nr_pad) * tile_e * 4
        + 2 * H * tile_e * 4
        + 2 * H * (nu_pad + nr_pad) * 4
        + 2 * 3 * tile_e * 4
    )
    assert vmem_needed < 40 * 1024 * 1024, (
        f"edge-tile working set ({vmem_needed} B) too large for VMEM; "
        "reduce tile_e or gather outside the kernel for huge node tables")
    vmem_limit = int(min(64 * 1024 * 1024, max(32 * 1024 * 1024, 2 * vmem_needed)))

    full = lambda shape: pl.BlockSpec(shape, lambda i: (0, 0))   # VMEM-resident constants
    lane_spec = pl.BlockSpec((1, tile_e), lambda i: (0, i))      # lane-dense edge stream

    out = pl.pallas_call(
        edge_score_kernel,
        out_shape=jax.ShapeDtypeStruct((1, e_pad), f32),
        grid_spec=pltpu.PrefetchScalarGridSpec(
            num_scalar_prefetch=0,
            grid=(num_tiles,),
            in_specs=[
                lane_spec, lane_spec,                        # edge endpoint indices
                full((H, nu_pad)), full((H, nr_pad)),        # transformed node tables
            ],
            out_specs=lane_spec,
        ),
        compiler_params=pltpu.CompilerParams(
            dimension_semantics=("parallel",),
            vmem_limit_bytes=vmem_limit,
        ),
    )(row_p, col_p, uo_t, ro_t)
    return out[0, :E]   # (E,)


# ----------------------------------------------------------------------------
# Pure-JAX reference (matches the PyTorch module at eval time) + test harness.
# ----------------------------------------------------------------------------
def _reference(z_user, z_rest, edge_label_index, params):
    row, col = edge_label_index[0], edge_label_index[1]
    u = z_user[row]
    r = z_rest[col]
    uo = jnp.maximum(u @ params["w1u"].T + params["b1u"][:, 0], 0.0) @ params["w2u"].T + params["b2u"][:, 0]
    ro = jnp.maximum(r @ params["w1r"].T + params["b1r"][:, 0], 0.0) @ params["w2r"].T + params["b2r"][:, 0]
    return jnp.sum(uo * ro, axis=-1)


def make_params(key, hidden):
    h2 = 2 * hidden
    ks = jax.random.split(key, 8)
    s1 = 1.0 / jnp.sqrt(hidden)
    s2 = 1.0 / jnp.sqrt(h2)
    return {
        # torch nn.Linear layout: W is (out_features, in_features); bias kept as a column.
        "w1u": jax.random.uniform(ks[0], (h2, hidden), jnp.float32, -s1, s1),
        "b1u": jax.random.uniform(ks[1], (h2, 1), jnp.float32, -s1, s1),
        "w2u": jax.random.uniform(ks[2], (hidden, h2), jnp.float32, -s2, s2),
        "b2u": jax.random.uniform(ks[3], (hidden, 1), jnp.float32, -s2, s2),
        "w1r": jax.random.uniform(ks[4], (h2, hidden), jnp.float32, -s1, s1),
        "b1r": jax.random.uniform(ks[5], (h2, 1), jnp.float32, -s1, s1),
        "w2r": jax.random.uniform(ks[6], (hidden, h2), jnp.float32, -s2, s2),
        "b2r": jax.random.uniform(ks[7], (hidden, 1), jnp.float32, -s2, s2),
    }


if __name__ == "__main__":
    hidden = 32
    n_users = 10
    n_rest = 12
    n_edges = 64

    key = jax.random.PRNGKey(0)
    k_zu, k_zr, k_row, k_col, k_p = jax.random.split(key, 5)

    z_user = jax.random.normal(k_zu, (n_users, hidden), jnp.float32)
    z_rest = jax.random.normal(k_zr, (n_rest, hidden), jnp.float32)
    edge_label_index = jnp.stack([
        jax.random.randint(k_row, (n_edges,), 0, n_users),
        jax.random.randint(k_col, (n_edges,), 0, n_rest),
    ])  # (2, E) like torch edge_label_index

    params = make_params(k_p, hidden)

    out = edge_decoder_improved(z_user, z_rest, edge_label_index, params)
    out = jax.block_until_ready(out)

    ref = _reference(z_user, z_rest, edge_label_index, params)
    assert out.shape == (n_edges,)
    assert jnp.allclose(out, ref, atol=1e-4, rtol=1e-4), "mismatch vs JAX reference"

    print("KERNEL_OK")
</pallas_src>

<mosaic_0001>
module attributes {stable_mosaic.version = 11 : i64} {
  func.func @node_mlp_kernel(%arg0: i32, %arg1: memref<32x128xf32, #tpu.memory_space<vmem>>, %arg2: memref<32x128xf32, #tpu.memory_space<vmem>>, %arg3: memref<64x32xf32, #tpu.memory_space<vmem>>, %arg4: memref<64x1xf32, #tpu.memory_space<vmem>>, %arg5: memref<32x64xf32, #tpu.memory_space<vmem>>, %arg6: memref<32x1xf32, #tpu.memory_space<vmem>>, %arg7: memref<64x32xf32, #tpu.memory_space<vmem>>, %arg8: memref<64x1xf32, #tpu.memory_space<vmem>>, %arg9: memref<32x64xf32, #tpu.memory_space<vmem>>, %arg10: memref<32x1xf32, #tpu.memory_space<vmem>>, %arg11: memref<32x128xf32, #tpu.memory_space<vmem>>, %arg12: memref<32x128xf32, #tpu.memory_space<vmem>>) attributes {dimension_semantics = [#tpu.dimension_semantics<arbitrary>], iteration_bounds = array<i64: 1>, scalar_prefetch = 0 : i64, scratch_operands = 0 : i64, tpu.core_type = #tpu.core_type<tc>, window_params = [{pipeline_mode = #tpu.pipeline_mode<synchronous>, transform_indices = @transform_0, window_bounds = array<i64: 32, 128>}, {pipeline_mode = #tpu.pipeline_mode<synchronous>, transform_indices = @transform_1, window_bounds = array<i64: 32, 128>}, {pipeline_mode = #tpu.pipeline_mode<synchronous>, transform_indices = @transform_2, window_bounds = array<i64: 64, 32>}, {pipeline_mode = #tpu.pipeline_mode<synchronous>, transform_indices = @transform_3, window_bounds = array<i64: 64, 1>}, {pipeline_mode = #tpu.pipeline_mode<synchronous>, transform_indices = @transform_4, window_bounds = array<i64: 32, 64>}, {pipeline_mode = #tpu.pipeline_mode<synchronous>, transform_indices = @transform_5, window_bounds = array<i64: 32, 1>}, {pipeline_mode = #tpu.pipeline_mode<synchronous>, transform_indices = @transform_6, window_bounds = array<i64: 64, 32>}, {pipeline_mode = #tpu.pipeline_mode<synchronous>, transform_indices = @transform_7, window_bounds = array<i64: 64, 1>}, {pipeline_mode = #tpu.pipeline_mode<synchronous>, transform_indices = @transform_8, window_bounds = array<i64: 32, 64>}, {pipeline_mode = #tpu.pipeline_mode<synchronous>, transform_indices = @transform_9, window_bounds = array<i64: 32, 1>}, {pipeline_mode = #tpu.pipeline_mode<synchronous>, transform_indices = @transform_10, window_bounds = array<i64: 32, 128>}, {pipeline_mode = #tpu.pipeline_mode<synchronous>, transform_indices = @transform_11, window_bounds = array<i64: 32, 128>}]} {
    %c0 = arith.constant 0 : index
    %c0_0 = arith.constant 0 : index
    %0 = vector.load %arg3[%c0, %c0_0] : memref<64x32xf32, #tpu.memory_space<vmem>>, vector<64x32xf32>
    %c0_1 = arith.constant 0 : index
    %c0_2 = arith.constant 0 : index
    %1 = vector.load %arg1[%c0_1, %c0_2] : memref<32x128xf32, #tpu.memory_space<vmem>>, vector<32x128xf32>
    %cst = arith.constant dense<0.000000e+00> : vector<64x128xf32>
    %2 = tpu.matmul %0, %1, %cst {dimension_numbers = #tpu.dot_dimension_numbers<[1], [0], [0], [1], [0, 0, 1, 1], [], []>} : vector<64x32xf32>, vector<32x128xf32>, vector<64x128xf32> -> vector<64x128xf32>
    %c0_3 = arith.constant 0 : index
    %c0_4 = arith.constant 0 : index
    %3 = vector.load %arg4[%c0_3, %c0_4] : memref<64x1xf32, #tpu.memory_space<vmem>>, vector<64x1xf32>
    %4 = vector.broadcast %3 : vector<64x1xf32> to vector<64x128xf32>
    %5 = arith.addf %2, %4 : vector<64x128xf32>
    %cst_5 = arith.constant 0.000000e+00 : f32
    %6 = vector.broadcast %cst_5 : f32 to vector<64x128xf32>
    %7 = arith.maximumf %5, %6 : vector<64x128xf32>
    %c0_6 = arith.constant 0 : index
    %c0_7 = arith.constant 0 : index
    %8 = vector.load %arg5[%c0_6, %c0_7] : memref<32x64xf32, #tpu.memory_space<vmem>>, vector<32x64xf32>
    %cst_8 = arith.constant dense<0.000000e+00> : vector<32x128xf32>
    %9 = tpu.matmul %8, %7, %cst_8 {dimension_numbers = #tpu.dot_dimension_numbers<[1], [0], [0], [1], [0, 0, 1, 1], [], []>} : vector<32x64xf32>, vector<64x128xf32>, vector<32x128xf32> -> vector<32x128xf32>
    %c0_9 = arith.constant 0 : index
    %c0_10 = arith.constant 0 : index
    %10 = vector.load %arg6[%c0_9, %c0_10] : memref<32x1xf32, #tpu.memory_space<vmem>>, vector<32x1xf32>
    %11 = vector.broadcast %10 : vector<32x1xf32> to vector<32x128xf32>
    %12 = arith.addf %9, %11 : vector<32x128xf32>
    %c0_11 = arith.constant 0 : index
    %c0_12 = arith.constant 0 : index
    %13 = vector.load %arg11[%c0_11, %c0_12] : memref<32x128xf32, #tpu.memory_space<vmem>>, vector<32x128xf32>
    tpu.vector_store %arg11[%c0_11, %c0_12], %12 {strides = array<i32>} : memref<32x128xf32, #tpu.memory_space<vmem>>, vector<32x128xf32>,
    %c0_13 = arith.constant 0 : index
    %c0_14 = arith.constant 0 : index
    %14 = vector.load %arg7[%c0_13, %c0_14] : memref<64x32xf32, #tpu.memory_space<vmem>>, vector<64x32xf32>
    %c0_15 = arith.constant 0 : index
    %c0_16 = arith.constant 0 : index
    %15 = vector.load %arg2[%c0_15, %c0_16] : memref<32x128xf32, #tpu.memory_space<vmem>>, vector<32x128xf32>
    %cst_17 = arith.constant dense<0.000000e+00> : vector<64x128xf32>
    %16 = tpu.matmul %14, %15, %cst_17 {dimension_numbers = #tpu.dot_dimension_numbers<[1], [0], [0], [1], [0, 0, 1, 1], [], []>} : vector<64x32xf32>, vector<32x128xf32>, vector<64x128xf32> -> vector<64x128xf32>
    %c0_18 = arith.constant 0 : index
    %c0_19 = arith.constant 0 : index
    %17 = vector.load %arg8[%c0_18, %c0_19] : memref<64x1xf32, #tpu.memory_space<vmem>>, vector<64x1xf32>
    %18 = vector.broadcast %17 : vector<64x1xf32> to vector<64x128xf32>
    %19 = arith.addf %16, %18 : vector<64x128xf32>
    %cst_20 = arith.constant 0.000000e+00 : f32
    %20 = vector.broadcast %cst_20 : f32 to vector<64x128xf32>
    %21 = arith.maximumf %19, %20 : vector<64x128xf32>
    %c0_21 = arith.constant 0 : index
    %c0_22 = arith.constant 0 : index
    %22 = vector.load %arg9[%c0_21, %c0_22] : memref<32x64xf32, #tpu.memory_space<vmem>>, vector<32x64xf32>
    %cst_23 = arith.constant dense<0.000000e+00> : vector<32x128xf32>
    %23 = tpu.matmul %22, %21, %cst_23 {dimension_numbers = #tpu.dot_dimension_numbers<[1], [0], [0], [1], [0, 0, 1, 1], [], []>} : vector<32x64xf32>, vector<64x128xf32>, vector<32x128xf32> -> vector<32x128xf32>
    %c0_24 = arith.constant 0 : index
    %c0_25 = arith.constant 0 : index
    %24 = vector.load %arg10[%c0_24, %c0_25] : memref<32x1xf32, #tpu.memory_space<vmem>>, vector<32x1xf32>
    %25 = vector.broadcast %24 : vector<32x1xf32> to vector<32x128xf32>
    %26 = arith.addf %23, %25 : vector<32x128xf32>
    %c0_26 = arith.constant 0 : index
    %c0_27 = arith.constant 0 : index
    %27 = vector.load %arg12[%c0_26, %c0_27] : memref<32x128xf32, #tpu.memory_space<vmem>>, vector<32x128xf32>
    tpu.vector_store %arg12[%c0_26, %c0_27], %26 {strides = array<i32>} : memref<32x128xf32, #tpu.memory_space<vmem>>, vector<32x128xf32>,
    return
  }
  func.func @transform_0(%arg0: i32) -> (i32, i32) {
    %c0_i32 = arith.constant 0 : i32
    %c0_i32_0 = arith.constant 0 : i32
    %c0_i32_1 = arith.constant 0 : i32
    return %c0_i32, %c0_i32_0 : i32, i32
  }
  func.func @transform_1(%arg0: i32) -> (i32, i32) {
    %c0_i32 = arith.constant 0 : i32
    %c0_i32_0 = arith.constant 0 : i32
    %c0_i32_1 = arith.constant 0 : i32
    return %c0_i32, %c0_i32_0 : i32, i32
  }
  func.func @transform_2(%arg0: i32) -> (i32, i32) {
    %c0_i32 = arith.constant 0 : i32
    %c0_i32_0 = arith.constant 0 : i32
    %c0_i32_1 = arith.constant 0 : i32
    return %c0_i32, %c0_i32_0 : i32, i32
  }
  func.func @transform_3(%arg0: i32) -> (i32, i32) {
    %c0_i32 = arith.constant 0 : i32
    %c0_i32_0 = arith.constant 0 : i32
    %c0_i32_1 = arith.constant 0 : i32
    return %c0_i32, %c0_i32_0 : i32, i32
  }
  func.func @transform_4(%arg0: i32) -> (i32, i32) {
    %c0_i32 = arith.constant 0 : i32
    %c0_i32_0 = arith.constant 0 : i32
    %c0_i32_1 = arith.constant 0 : i32
    return %c0_i32, %c0_i32_0 : i32, i32
  }
  func.func @transform_5(%arg0: i32) -> (i32, i32) {
    %c0_i32 = arith.constant 0 : i32
    %c0_i32_0 = arith.constant 0 : i32
    %c0_i32_1 = arith.constant 0 : i32
    return %c0_i32, %c0_i32_0 : i32, i32
  }
  func.func @transform_6(%arg0: i32) -> (i32, i32) {
    %c0_i32 = arith.constant 0 : i32
    %c0_i32_0 = arith.constant 0 : i32
    %c0_i32_1 = arith.constant 0 : i32
    return %c0_i32, %c0_i32_0 : i32, i32
  }
  func.func @transform_7(%arg0: i32) -> (i32, i32) {
    %c0_i32 = arith.constant 0 : i32
    %c0_i32_0 = arith.constant 0 : i32
    %c0_i32_1 = arith.constant 0 : i32
    return %c0_i32, %c0_i32_0 : i32, i32
  }
  func.func @transform_8(%arg0: i32) -> (i32, i32) {
    %c0_i32 = arith.constant 0 : i32
    %c0_i32_0 = arith.constant 0 : i32
    %c0_i32_1 = arith.constant 0 : i32
    return %c0_i32, %c0_i32_0 : i32, i32
  }
  func.func @transform_9(%arg0: i32) -> (i32, i32) {
    %c0_i32 = arith.constant 0 : i32
    %c0_i32_0 = arith.constant 0 : i32
    %c0_i32_1 = arith.constant 0 : i32
    return %c0_i32, %c0_i32_0 : i32, i32
  }
  func.func @transform_10(%arg0: i32) -> (i32, i32) {
    %c0_i32 = arith.constant 0 : i32
    %c0_i32_0 = arith.constant 0 : i32
    %c0_i32_1 = arith.constant 0 : i32
    return %c0_i32, %c0_i32_0 : i32, i32
  }
  func.func @transform_11(%arg0: i32) -> (i32, i32) {
    %c0_i32 = arith.constant 0 : i32
    %c0_i32_0 = arith.constant 0 : i32
    %c0_i32_1 = arith.constant 0 : i32
    return %c0_i32, %c0_i32_0 : i32, i32
  }
}

</mosaic_0001>

<llo_original>
// kernel: tpu_custom_call.1
$region0: #{tpu_custom_call.1}
  #allocation0 [shape = 'u32[]', space=smem, size = 0x4, offset = 0x4, fixed_abs, tag = 'smem constant byte address 0x4 - core index']
  #allocation1 [shape = 'u32[144,128]{1,0:T(1,128)}', space=vmem, size = 0x12000, scoped, tag = 'internal scratch']
  %s0 = inlined_call_operand.vmem [shape: f32[32,128], index: 0, kind: input, shape index: {}]
  %s1 = inlined_call_operand.vmem [shape: f32[32,128], index: 1, kind: input, shape index: {}]
  %s2 = inlined_call_operand.vmem [shape: f32[64,32], index: 2, kind: input, shape index: {}]
  %s3 = inlined_call_operand.vmem [shape: f32[64,1], index: 3, kind: input, shape index: {}]
  %s4 = inlined_call_operand.vmem [shape: f32[32,64], index: 4, kind: input, shape index: {}]
  %s5 = inlined_call_operand.vmem [shape: f32[32,1], index: 5, kind: input, shape index: {}]
  %s6 = inlined_call_operand.vmem [shape: f32[64,32], index: 6, kind: input, shape index: {}]
  %s7 = inlined_call_operand.vmem [shape: f32[64,1], index: 7, kind: input, shape index: {}]
  %s8 = inlined_call_operand.vmem [shape: f32[32,64], index: 8, kind: input, shape index: {}]
  %s9 = inlined_call_operand.vmem [shape: f32[32,1], index: 9, kind: input, shape index: {}]
  %s10 = inlined_call_operand.hbm [shape: f32[32,128], index: 10, kind: output, shape index: {0}]
  %s11 = inlined_call_operand.hbm [shape: f32[32,128], index: 11, kind: output, shape index: {1}]
  %12 = xla_tuple %s10, %s11
  %s13 = sld [smem:[#allocation0]]
  $region58: #{tpu_custom_call.1} parent=0
    _
  %s15 = ssub.s32 1, %s13
  %s16 = scalar_select 0, %s15, %s13
  $region1: #{tpu_custom_call.1} parent=0
    #allocation2 [shape = 'u8[16384]{0}', space=vmem, size = 0x4000, scoped, tag = 'output window, operand 0, single buffered']
    #allocation3 [shape = 's32[1]{0}', space=sflag, size = 0x4, scoped, tag = 'scoped memory for tpu_custom_call.1']
    #allocation4 [shape = 'u8[16384]{0}', space=vmem, size = 0x4000, scoped, tag = 'output window, operand 1, single buffered']
    #allocation5 [shape = 's32[1]{0}', space=sflag, size = 0x4, scoped, tag = 'scoped memory for tpu_custom_call.1']
    %17 = vsyncpa [#allocation3], 0
    %18 = vsyncpa [#allocation5], 0
    // Predicated region
    $region2: #{tpu_custom_call.1} parent=1 // pred_check
      _
    $region3: #{tpu_custom_call.1} parent=1 // pred_check_branch
      %20 = sbr.rel (0) target = $region5
    $region4: #{tpu_custom_call.1} parent=1 // pred_region
      _
    $region5: #{tpu_custom_call.1} parent=1 // pred_fallthru
      _
    // Predicated region
    $region6: #{tpu_custom_call.1} parent=1 // pred_check
      _
    $region7: #{tpu_custom_call.1} parent=1 // pred_check_branch
      %22 = sbr.rel (0) target = $region9
    $region8: #{tpu_custom_call.1} parent=1 // pred_region
      _
    $region9: #{tpu_custom_call.1} parent=1 // pred_fallthru
      _
    // Predicated region
    $region10: #{tpu_custom_call.1} parent=1 // pred_check
      _
    $region11: #{tpu_custom_call.1} parent=1 // pred_check_branch
      %24 = sbr.rel (0) target = $region13
    $region12: #{tpu_custom_call.1} parent=1 // pred_region
      _
    $region13: #{tpu_custom_call.1} parent=1 // pred_fallthru
      _
    // Predicated region
    $region14: #{tpu_custom_call.1} parent=1 // pred_check
      _
    $region15: #{tpu_custom_call.1} parent=1 // pred_check_branch
      %26 = sbr.rel (0) target = $region17
    $region16: #{tpu_custom_call.1} parent=1 // pred_region
      _
    $region17: #{tpu_custom_call.1} parent=1 // pred_fallthru
      _
    // Predicated region
    $region18: #{tpu_custom_call.1} parent=1 // pred_check
      _
    $region19: #{tpu_custom_call.1} parent=1 // pred_check_branch
      %28 = sbr.rel (0) target = $region21
    $region20: #{tpu_custom_call.1} parent=1 // pred_region
      _
    $region21: #{tpu_custom_call.1} parent=1 // pred_fallthru
      _
    // Predicated region
    $region22: #{tpu_custom_call.1} parent=1 // pred_check
      _
    $region23: #{tpu_custom_call.1} parent=1 // pred_check_branch
      %30 = sbr.rel (0) target = $region25
    $region24: #{tpu_custom_call.1} parent=1 // pred_region
      _
    $region25: #{tpu_custom_call.1} parent=1 // pred_fallthru
      _
    // Predicated region
    $region26: #{tpu_custom_call.1} parent=1 // pred_check
      _
    $region27: #{tpu_custom_call.1} parent=1 // pred_check_branch
      %32 = sbr.rel (0) target = $region29
    $region28: #{tpu_custom_call.1} parent=1 // pred_region
      _
    $region29: #{tpu_custom_call.1} parent=1 // pred_fallthru
      _
    // Predicated region
    $region30: #{tpu_custom_call.1} parent=1 // pred_check
      _
    $region31: #{tpu_custom_call.1} parent=1 // pred_check_branch
      %34 = sbr.rel (0) target = $region33
    $region32: #{tpu_custom_call.1} parent=1 // pred_region
      _
    $region33: #{tpu_custom_call.1} parent=1 // pred_fallthru
      _
    // Predicated region
    $region34: #{tpu_custom_call.1} parent=1 // pred_check
      _
    $region35: #{tpu_custom_call.1} parent=1 // pred_check_branch
      %36 = sbr.rel (0) target = $region37
    $region36: #{tpu_custom_call.1} parent=1 // pred_region
      _
    $region37: #{tpu_custom_call.1} parent=1 // pred_fallthru
      _
    // Predicated region
    $region38: #{tpu_custom_call.1} parent=1 // pred_check
      _
    $region39: #{tpu_custom_call.1} parent=1 // pred_check_branch
      %38 = sbr.rel (0) target = $region41
    $region40: #{tpu_custom_call.1} parent=1 // pred_region
      _
    $region41: #{tpu_custom_call.1} parent=1 // pred_fallthru
      _
    %v39 = vld [vmem:[%s2] sm:$0xff]
    %v40 = vld [vmem:[%s2 + $0x8] sm:$0xff]
    %v41 = vld [vmem:[%s2 + $0x10] sm:$0xff]
    %v42 = vld [vmem:[%s2 + $0x18] sm:$0xff]
    %v43 = vld [vmem:[%s2 + $0x20] sm:$0xff]
    %v44 = vld [vmem:[%s2 + $0x28] sm:$0xff]
    %v45 = vld [vmem:[%s2 + $0x30] sm:$0xff]
    %v46 = vld [vmem:[%s2 + $0x38] sm:$0xff]
    %v47 = vld [vmem:[%s0] sm:$0xff]
    %v48 = vld [vmem:[%s0 + $0x8] sm:$0xff]
    %v49 = vld [vmem:[%s0 + $0x10] sm:$0xff]
    %v50 = vld [vmem:[%s0 + $0x18] sm:$0xff]
    %v51 = vld [vmem:[%s3] sm:$0xff]
    %v52 = vld [vmem:[%s3 + $0x8] sm:$0xff]
    %v53 = vld [vmem:[%s3 + $0x10] sm:$0xff]
    %v54 = vld [vmem:[%s3 + $0x18] sm:$0xff]
    %v55 = vld [vmem:[%s3 + $0x20] sm:$0xff]
    %v56 = vld [vmem:[%s3 + $0x28] sm:$0xff]
    %v57 = vld [vmem:[%s3 + $0x30] sm:$0xff]
    %v58 = vld [vmem:[%s3 + $0x38] sm:$0xff]
    %60 = vset.pattern.permute.xlu0 0
    %61 = vperm.xlu0 %60, %v51
    %v62 = vpop.permute.xlu0 %61
    %65 = vset.pattern.permute.xlu0 0
    %66 = vperm.xlu0 %65, %v52
    %v67 = vpop.permute.xlu0 %66
    %70 = vset.pattern.permute.xlu0 0
    %71 = vperm.xlu0 %70, %v53
    %v72 = vpop.permute.xlu0 %71
    %75 = vset.pattern.permute.xlu0 0
    %76 = vperm.xlu0 %75, %v54
    %v77 = vpop.permute.xlu0 %76
    %80 = vset.pattern.permute.xlu0 0
    %81 = vperm.xlu0 %80, %v55
    %v82 = vpop.permute.xlu0 %81
    %85 = vset.pattern.permute.xlu0 0
    %86 = vperm.xlu0 %85, %v56
    %v87 = vpop.permute.xlu0 %86
    %90 = vset.pattern.permute.xlu0 0
    %91 = vperm.xlu0 %90, %v57
    %v92 = vpop.permute.xlu0 %91
    %95 = vset.pattern.permute.xlu0 0
    %96 = vperm.xlu0 %95, %v58
    %v97 = vpop.permute.xlu0 %96
    %vm99 = vcmask 261120
    %v101 = vsel %vm99, %v39, 0
    %v104 = vsel %vm99, %v40, 0
    %v107 = vsel %vm99, %v41, 0
    %v110 = vsel %vm99, %v42, 0
    %v113 = vsel %vm99, %v43, 0
    %v116 = vsel %vm99, %v44, 0
    %v119 = vsel %vm99, %v45, 0
    %v122 = vsel %vm99, %v46, 0
    %124 = vmatprep.subr.mxu0 0.0
    %125 = vmatpush1.msra.mxu0 0.0
    %126 = vmatprep.subr.mxu0 0.0
    %127 = vmatpush1.msra.mxu0 0.0
    %128 = vmatprep.subr.mxu0 0.0
    %129 = vmatpush1.msra.mxu0 0.0
    %130 = vmatprep.subr.mxu0 0.0
    %131 = vmatpush1.msra.mxu0 0.0
    %132 = vmatprep.subr.mxu0 0.0
    %133 = vmatpush1.msra.mxu0 0.0
    %134 = vmatprep.subr.mxu0 0.0
    %135 = vmatpush1.msra.mxu0 0.0
    %136 = vmatprep.subr.mxu0 0.0
    %137 = vmatpush1.msra.mxu0 0.0
    %138 = vmatprep.subr.mxu0 0.0
    %139 = vmatpush1.msra.mxu0 0.0
    %140 = vmatprep.subr.mxu0 0.0
    %141 = vmatpush1.msra.mxu0 0.0
    %142 = vmatprep.subr.mxu0 0.0
    %143 = vmatpush1.msra.mxu0 0.0
    %144 = vmatprep.subr.mxu0 0.0
    %145 = vmatpush1.msra.mxu0 0.0
    %146 = vmatprep.subr.mxu0 0.0
    %147 = vmatpush1.msra.mxu0 0.0
    %148 = vmatprep.subr.mxu0 0.0
    %149 = vmatpush1.msra.mxu0 %v50
    %150 = vmatprep.subr.mxu0 0.0
    %151 = vmatpush1.msra.mxu0 %v49
    %152 = vmatprep.subr.mxu0 0.0
    %153 = vmatpush1.msra.mxu0 %v48
    %154 = vmatprep.subr.mxu0 0.0
    %155 = vmatpush1.msra.mxu0 %v47
    %156 = vmatprep.subr.mxu0 0.0
    %157 = vmatpush2.msra.mxu0 0.0
    %158 = vmatprep.subr.mxu0 0.0
    %159 = vmatpush2.msra.mxu0 0.0
    %160 = vmatprep.subr.mxu0 0.0
    %161 = vmatpush2.msra.mxu0 0.0
    %162 = vmatprep.subr.mxu0 0.0
    %163 = vmatpush2.msra.mxu0 0.0
    %164 = vmatprep.subr.mxu0 0.0
    %165 = vmatpush2.msra.mxu0 0.0
    %166 = vmatprep.subr.mxu0 0.0
    %167 = vmatpush2.msra.mxu0 0.0
    %168 = vmatprep.subr.mxu0 0.0
    %169 = vmatpush2.msra.mxu0 0.0
    %170 = vmatprep.subr.mxu0 0.0
    %171 = vmatpush2.msra.mxu0 0.0
    %172 = vmatprep.subr.mxu0 0.0
    %173 = vmatpush2.msra.mxu0 0.0
    %174 = vmatprep.subr.mxu0 0.0
    %175 = vmatpush2.msra.mxu0 0.0
    %176 = vmatprep.subr.mxu0 0.0
    %177 = vmatpush2.msra.mxu0 0.0
    %178 = vmatprep.subr.mxu0 0.0
    %179 = vmatpush2.msra.mxu0 0.0
    %180 = vmatprep.subr.mxu0 0.0
    %181 = vmatpush2.msra.mxu0 0.0
    %182 = vmatprep.subr.mxu0 0.0
    %183 = vmatpush2.msra.mxu0 0.0
    %184 = vmatprep.subr.mxu0 0.0
    %185 = vmatpush2.msra.mxu0 0.0
    %186 = vmatprep.subr.mxu0 0.0
    %187 = vmatpush2.msra.mxu0 0.0
    %188 = vmatprep.mubr.f32.mxu0 0.0
    %189 = vmatmul.mubr.f32.gmra.mxu0 %v101
    %v190 = vpop.f32.mrf.mxu0
    %v191 = vadd.f32 %v62, %v190
    %v192 = vpop.f32.mrf.mxu0
    %193 = vmatprep.mubr.f32.mxu0 0.0
    %194 = vmatmul.mubr.f32.gmra.mxu0 %v104
    %v195 = vpop.f32.mrf.mxu0
    %v196 = vadd.f32 %v67, %v195
    %v197 = vpop.f32.mrf.mxu0
    %198 = vmatprep.mubr.f32.mxu0 0.0
    %199 = vmatmul.mubr.f32.gmra.mxu0 %v107
    %v200 = vpop.f32.mrf.mxu0
    %v201 = vadd.f32 %v72, %v200
    %v202 = vpop.f32.mrf.mxu0
    %203 = vmatprep.mubr.f32.mxu0 0.0
    %204 = vmatmul.mubr.f32.gmra.mxu0 %v110
    %v205 = vpop.f32.mrf.mxu0
    %v206 = vadd.f32 %v77, %v205
    %v207 = vpop.f32.mrf.mxu0
    %208 = vmatprep.mubr.f32.mxu0 0.0
    %209 = vmatmul.mubr.f32.gmra.mxu0 %v113
    %v210 = vpop.f32.mrf.mxu0
    %v211 = vadd.f32 %v82, %v210
    %v212 = vpop.f32.mrf.mxu0
    %213 = vmatprep.mubr.f32.mxu0 0.0
    %214 = vmatmul.mubr.f32.gmra.mxu0 %v116
    %v215 = vpop.f32.mrf.mxu0
    %v216 = vadd.f32 %v87, %v215
    %v217 = vpop.f32.mrf.mxu0
    %218 = vmatprep.mubr.f32.mxu0 0.0
    %219 = vmatmul.mubr.f32.gmra.mxu0 %v119
    %v220 = vpop.f32.mrf.mxu0
    %v221 = vadd.f32 %v92, %v220
    %v222 = vpop.f32.mrf.mxu0
    %223 = vmatprep.mubr.f32.mxu0 0.0
    %224 = vmatmul.mubr.f32.gmra.mxu0 %v122
    %v225 = vpop.f32.mrf.mxu0
    %v226 = vadd.f32 %v97, %v225
    %v227 = vpop.f32.mrf.mxu0
    %228 = vdwg.mxu0
    %v229 = vmax.f32 %v191, 0.0
    %v230 = vmax.f32 %v196, 0.0
    %v231 = vmax.f32 %v201, 0.0
    %v232 = vmax.f32 %v206, 0.0
    %v233 = vmax.f32 %v211, 0.0
    %v234 = vmax.f32 %v216, 0.0
    %v235 = vmax.f32 %v221, 0.0
    %v236 = vmax.f32 %v226, 0.0
    %v237 = vld [vmem:[%s4] sm:$0xff]
    %v238 = vld [vmem:[%s4 + $0x8] sm:$0xff]
    %v239 = vld [vmem:[%s4 + $0x10] sm:$0xff]
    %v240 = vld [vmem:[%s4 + $0x18] sm:$0xff]
    %v241 = vld [vmem:[%s5] sm:$0xff]
    %v242 = vld [vmem:[%s5 + $0x8] sm:$0xff]
    %v243 = vld [vmem:[%s5 + $0x10] sm:$0xff]
    %v244 = vld [vmem:[%s5 + $0x18] sm:$0xff]
    %246 = vset.pattern.permute.xlu0 0
    %247 = vperm.xlu0 %246, %v241
    %v248 = vpop.permute.xlu0 %247
    %251 = vset.pattern.permute.xlu0 0
    %252 = vperm.xlu0 %251, %v242
    %v253 = vpop.permute.xlu0 %252
    %256 = vset.pattern.permute.xlu0 0
    %257 = vperm.xlu0 %256, %v243
    %v258 = vpop.permute.xlu0 %257
    %261 = vset.pattern.permute.xlu0 0
    %262 = vperm.xlu0 %261, %v244
    %v263 = vpop.permute.xlu0 %262
    %vm265 = vcmask 523264
    %v267 = vsel %vm265, %v237, 0
    %v270 = vsel %vm265, %v238, 0
    %v273 = vsel %vm265, %v239, 0
    %v276 = vsel %vm265, %v240, 0
    %278 = vmatprep.subr.mxu0 0.0
    %279 = vmatpush1.msra.mxu0 0.0
    %280 = vmatprep.subr.mxu0 0.0
    %281 = vmatpush1.msra.mxu0 0.0
    %282 = vmatprep.subr.mxu0 0.0
    %283 = vmatpush1.msra.mxu0 0.0
    %284 = vmatprep.subr.mxu0 0.0
    %285 = vmatpush1.msra.mxu0 0.0
    %286 = vmatprep.subr.mxu0 0.0
    %287 = vmatpush1.msra.mxu0 0.0
    %288 = vmatprep.subr.mxu0 0.0
    %289 = vmatpush1.msra.mxu0 0.0
    %290 = vmatprep.subr.mxu0 0.0
    %291 = vmatpush1.msra.mxu0 0.0
    %292 = vmatprep.subr.mxu0 0.0
    %293 = vmatpush1.msra.mxu0 0.0
    %294 = vmatprep.subr.mxu0 0.0
    %295 = vmatpush1.msra.mxu0 %v236
    %296 = vmatprep.subr.mxu0 0.0
    %297 = vmatpush1.msra.mxu0 %v235
    %298 = vmatprep.subr.mxu0 0.0
    %299 = vmatpush1.msra.mxu0 %v234
    %300 = vmatprep.subr.mxu0 0.0
    %301 = vmatpush1.msra.mxu0 %v233
    %302 = vmatprep.subr.mxu0 0.0
    %303 = vmatpush1.msra.mxu0 %v232
    %304 = vmatprep.subr.mxu0 0.0
    %305 = vmatpush1.msra.mxu0 %v231
    %306 = vmatprep.subr.mxu0 0.0
    %307 = vmatpush1.msra.mxu0 %v230
    %308 = vmatprep.subr.mxu0 0.0
    %309 = vmatpush1.msra.mxu0 %v229
    %310 = vmatprep.subr.mxu0 0.0
    %311 = vmatpush2.msra.mxu0 0.0
    %312 = vmatprep.subr.mxu0 0.0
    %313 = vmatpush2.msra.mxu0 0.0
    %314 = vmatprep.subr.mxu0 0.0
    %315 = vmatpush2.msra.mxu0 0.0
    %316 = vmatprep.subr.mxu0 0.0
    %317 = vmatpush2.msra.mxu0 0.0
    %318 = vmatprep.subr.mxu0 0.0
    %319 = vmatpush2.msra.mxu0 0.0
    %320 = vmatprep.subr.mxu0 0.0
    %321 = vmatpush2.msra.mxu0 0.0
    %322 = vmatprep.subr.mxu0 0.0
    %323 = vmatpush2.msra.mxu0 0.0
    %324 = vmatprep.subr.mxu0 0.0
    %325 = vmatpush2.msra.mxu0 0.0
    %326 = vmatprep.subr.mxu0 0.0
    %327 = vmatpush2.msra.mxu0 0.0
    %328 = vmatprep.subr.mxu0 0.0
    %329 = vmatpush2.msra.mxu0 0.0
    %330 = vmatprep.subr.mxu0 0.0
    %331 = vmatpush2.msra.mxu0 0.0
    %332 = vmatprep.subr.mxu0 0.0
    %333 = vmatpush2.msra.mxu0 0.0
    %334 = vmatprep.subr.mxu0 0.0
    %335 = vmatpush2.msra.mxu0 0.0
    %336 = vmatprep.subr.mxu0 0.0
    %337 = vmatpush2.msra.mxu0 0.0
    %338 = vmatprep.subr.mxu0 0.0
    %339 = vmatpush2.msra.mxu0 0.0
    %340 = vmatprep.subr.mxu0 0.0
    %341 = vmatpush2.msra.mxu0 0.0
    %342 = vmatprep.mubr.f32.mxu0 0.0
    %343 = vmatmul.mubr.f32.gmra.mxu0 %v267
    %v344 = vpop.f32.mrf.mxu0
    %v345 = vadd.f32 %v248, %v344
    %v346 = vpop.f32.mrf.mxu0
    %347 = vmatprep.mubr.f32.mxu0 0.0
    %348 = vmatmul.mubr.f32.gmra.mxu0 %v270
    %v349 = vpop.f32.mrf.mxu0
    %v350 = vadd.f32 %v253, %v349
    %v351 = vpop.f32.mrf.mxu0
    %352 = vmatprep.mubr.f32.mxu0 0.0
    %353 = vmatmul.mubr.f32.gmra.mxu0 %v273
    %v354 = vpop.f32.mrf.mxu0
    %v355 = vadd.f32 %v258, %v354
    %v356 = vpop.f32.mrf.mxu0
    %357 = vmatprep.mubr.f32.mxu0 0.0
    %358 = vmatmul.mubr.f32.gmra.mxu0 %v276
    %v359 = vpop.f32.mrf.mxu0
    %v360 = vadd.f32 %v263, %v359
    %v361 = vpop.f32.mrf.mxu0
    %362 = vdwg.mxu0
    %363 = vst [vmem:[#allocation2] sm:$0xff] %v345
    %364 = vst [vmem:[#allocation2 + $0x8] sm:$0xff] %v350
    %365 = vst [vmem:[#allocation2 + $0x10] sm:$0xff] %v355
    %366 = vst [vmem:[#allocation2 + $0x18] sm:$0xff] %v360
    %v367 = vld [vmem:[%s6] sm:$0xff]
    %v368 = vld [vmem:[%s6 + $0x8] sm:$0xff]
    %v369 = vld [vmem:[%s6 + $0x10] sm:$0xff]
    %v370 = vld [vmem:[%s6 + $0x18] sm:$0xff]
    %v371 = vld [vmem:[%s6 + $0x20] sm:$0xff]
    %v372 = vld [vmem:[%s6 + $0x28] sm:$0xff]
    %v373 = vld [vmem:[%s6 + $0x30] sm:$0xff]
    %v374 = vld [vmem:[%s6 + $0x38] sm:$0xff]
    %v375 = vld [vmem:[%s1] sm:$0xff]
    %v376 = vld [vmem:[%s1 + $0x8] sm:$0xff]
    %v377 = vld [vmem:[%s1 + $0x10] sm:$0xff]
    %v378 = vld [vmem:[%s1 + $0x18] sm:$0xff]
    %v379 = vld [vmem:[%s7] sm:$0xff]
    %v380 = vld [vmem:[%s7 + $0x8] sm:$0xff]
    %v381 = vld [vmem:[%s7 + $0x10] sm:$0xff]
    %v382 = vld [vmem:[%s7 + $0x18] sm:$0xff]
    %v383 = vld [vmem:[%s7 + $0x20] sm:$0xff]
    %v384 = vld [vmem:[%s7 + $0x28] sm:$0xff]
    %v385 = vld [vmem:[%s7 + $0x30] sm:$0xff]
    %v386 = vld [vmem:[%s7 + $0x38] sm:$0xff]
    %388 = vset.pattern.permute.xlu0 0
    %389 = vperm.xlu0 %388, %v379
    %v390 = vpop.permute.xlu0 %389
    %393 = vset.pattern.permute.xlu0 0
    %394 = vperm.xlu0 %393, %v380
    %v395 = vpop.permute.xlu0 %394
    %398 = vset.pattern.permute.xlu0 0
    %399 = vperm.xlu0 %398, %v381
    %v400 = vpop.permute.xlu0 %399
    %403 = vset.pattern.permute.xlu0 0
    %404 = vperm.xlu0 %403, %v382
    %v405 = vpop.permute.xlu0 %404
    %408 = vset.pattern.permute.xlu0 0
    %409 = vperm.xlu0 %408, %v383
    %v410 = vpop.permute.xlu0 %409
    %413 = vset.pattern.permute.xlu0 0
    %414 = vperm.xlu0 %413, %v384
    %v415 = vpop.permute.xlu0 %414
    %418 = vset.pattern.permute.xlu0 0
    %419 = vperm.xlu0 %418, %v385
    %v420 = vpop.permute.xlu0 %419
    %423 = vset.pattern.permute.xlu0 0
    %424 = vperm.xlu0 %423, %v386
    %v425 = vpop.permute.xlu0 %424
    %v428 = vsel %vm99, %v367, 0
    %v431 = vsel %vm99, %v368, 0
    %v434 = vsel %vm99, %v369, 0
    %v437 = vsel %vm99, %v370, 0
    %v440 = vsel %vm99, %v371, 0
    %v443 = vsel %vm99, %v372, 0
    %v446 = vsel %vm99, %v373, 0
    %v449 = vsel %vm99, %v374, 0
    %451 = vmatprep.subr.mxu0 0.0
    %452 = vmatpush1.msra.mxu0 0.0
    %453 = vmatprep.subr.mxu0 0.0
    %454 = vmatpush1.msra.mxu0 0.0
    %455 = vmatprep.subr.mxu0 0.0
    %456 = vmatpush1.msra.mxu0 0.0
    %457 = vmatprep.subr.mxu0 0.0
    %458 = vmatpush1.msra.mxu0 0.0
    %459 = vmatprep.subr.mxu0 0.0
    %460 = vmatpush1.msra.mxu0 0.0
    %461 = vmatprep.subr.mxu0 0.0
    %462 = vmatpush1.msra.mxu0 0.0
    %463 = vmatprep.subr.mxu0 0.0
    %464 = vmatpush1.msra.mxu0 0.0
    %465 = vmatprep.subr.mxu0 0.0
    %466 = vmatpush1.msra.mxu0 0.0
    %467 = vmatprep.subr.mxu0 0.0
    %468 = vmatpush1.msra.mxu0 0.0
    %469 = vmatprep.subr.mxu0 0.0
    %470 = vmatpush1.msra.mxu0 0.0
    %471 = vmatprep.subr.mxu0 0.0
    %472 = vmatpush1.msra.mxu0 0.0
    %473 = vmatprep.subr.mxu0 0.0
    %474 = vmatpush1.msra.mxu0 0.0
    %475 = vmatprep.subr.mxu0 0.0
    %476 = vmatpush1.msra.mxu0 %v378
    %477 = vmatprep.subr.mxu0 0.0
    %478 = vmatpush1.msra.mxu0 %v377
    %479 = vmatprep.subr.mxu0 0.0
    %480 = vmatpush1.msra.mxu0 %v376
    %481 = vmatprep.subr.mxu0 0.0
    %482 = vmatpush1.msra.mxu0 %v375
    %483 = vmatprep.subr.mxu0 0.0
    %484 = vmatpush2.msra.mxu0 0.0
    %485 = vmatprep.subr.mxu0 0.0
    %486 = vmatpush2.msra.mxu0 0.0
    %487 = vmatprep.subr.mxu0 0.0
    %488 = vmatpush2.msra.mxu0 0.0
    %489 = vmatprep.subr.mxu0 0.0
    %490 = vmatpush2.msra.mxu0 0.0
    %491 = vmatprep.subr.mxu0 0.0
    %492 = vmatpush2.msra.mxu0 0.0
    %493 = vmatprep.subr.mxu0 0.0
    %494 = vmatpush2.msra.mxu0 0.0
    %495 = vmatprep.subr.mxu0 0.0
    %496 = vmatpush2.msra.mxu0 0.0
    %497 = vmatprep.subr.mxu0 0.0
    %498 = vmatpush2.msra.mxu0 0.0
    %499 = vmatprep.subr.mxu0 0.0
    %500 = vmatpush2.msra.mxu0 0.0
    %501 = vmatprep.subr.mxu0 0.0
    %502 = vmatpush2.msra.mxu0 0.0
    %503 = vmatprep.subr.mxu0 0.0
    %504 = vmatpush2.msra.mxu0 0.0
    %505 = vmatprep.subr.mxu0 0.0
    %506 = vmatpush2.msra.mxu0 0.0
    %507 = vmatprep.subr.mxu0 0.0
    %508 = vmatpush2.msra.mxu0 0.0
    %509 = vmatprep.subr.mxu0 0.0
    %510 = vmatpush2.msra.mxu0 0.0
    %511 = vmatprep.subr.mxu0 0.0
    %512 = vmatpush2.msra.mxu0 0.0
    %513 = vmatprep.subr.mxu0 0.0
    %514 = vmatpush2.msra.mxu0 0.0
    %515 = vmatprep.mubr.f32.mxu0 0.0
    %516 = vmatmul.mubr.f32.gmra.mxu0 %v428
    %v517 = vpop.f32.mrf.mxu0
    %v518 = vadd.f32 %v390, %v517
    %v519 = vpop.f32.mrf.mxu0
    %520 = vmatprep.mubr.f32.mxu0 0.0
    %521 = vmatmul.mubr.f32.gmra.mxu0 %v431
    %v522 = vpop.f32.mrf.mxu0
    %v523 = vadd.f32 %v395, %v522
    %v524 = vpop.f32.mrf.mxu0
    %525 = vmatprep.mubr.f32.mxu0 0.0
    %526 = vmatmul.mubr.f32.gmra.mxu0 %v434
    %v527 = vpop.f32.mrf.mxu0
    %v528 = vadd.f32 %v400, %v527
    %v529 = vpop.f32.mrf.mxu0
    %530 = vmatprep.mubr.f32.mxu0 0.0
    %531 = vmatmul.mubr.f32.gmra.mxu0 %v437
    %v532 = vpop.f32.mrf.mxu0
    %v533 = vadd.f32 %v405, %v532
    %v534 = vpop.f32.mrf.mxu0
    %535 = vmatprep.mubr.f32.mxu0 0.0
    %536 = vmatmul.mubr.f32.gmra.mxu0 %v440
    %v537 = vpop.f32.mrf.mxu0
    %v538 = vadd.f32 %v410, %v537
    %v539 = vpop.f32.mrf.mxu0
    %540 = vmatprep.mubr.f32.mxu0 0.0
    %541 = vmatmul.mubr.f32.gmra.mxu0 %v443
    %v542 = vpop.f32.mrf.mxu0
    %v543 = vadd.f32 %v415, %v542
    %v544 = vpop.f32.mrf.mxu0
    %545 = vmatprep.mubr.f32.mxu0 0.0
    %546 = vmatmul.mubr.f32.gmra.mxu0 %v446
    %v547 = vpop.f32.mrf.mxu0
    %v548 = vadd.f32 %v420, %v547
    %v549 = vpop.f32.mrf.mxu0
    %550 = vmatprep.mubr.f32.mxu0 0.0
    %551 = vmatmul.mubr.f32.gmra.mxu0 %v449
    %v552 = vpop.f32.mrf.mxu0
    %v553 = vadd.f32 %v425, %v552
    %v554 = vpop.f32.mrf.mxu0
    %555 = vdwg.mxu0
    %v556 = vmax.f32 %v518, 0.0
    %v557 = vmax.f32 %v523, 0.0
    %v558 = vmax.f32 %v528, 0.0
    %v559 = vmax.f32 %v533, 0.0
    %v560 = vmax.f32 %v538, 0.0
    %v561 = vmax.f32 %v543, 0.0
    %v562 = vmax.f32 %v548, 0.0
    %v563 = vmax.f32 %v553, 0.0
    %v564 = vld [vmem:[%s8] sm:$0xff]
    %v565 = vld [vmem:[%s8 + $0x8] sm:$0xff]
    %v566 = vld [vmem:[%s8 + $0x10] sm:$0xff]
    %v567 = vld [vmem:[%s8 + $0x18] sm:$0xff]
    %v568 = vld [vmem:[%s9] sm:$0xff]
    %v569 = vld [vmem:[%s9 + $0x8] sm:$0xff]
    %v570 = vld [vmem:[%s9 + $0x10] sm:$0xff]
    %v571 = vld [vmem:[%s9 + $0x18] sm:$0xff]
    %573 = vset.pattern.permute.xlu0 0
    %574 = vperm.xlu0 %573, %v568
    %v575 = vpop.permute.xlu0 %574
    %578 = vset.pattern.permute.xlu0 0
    %579 = vperm.xlu0 %578, %v569
    %v580 = vpop.permute.xlu0 %579
    %583 = vset.pattern.permute.xlu0 0
    %584 = vperm.xlu0 %583, %v570
    %v585 = vpop.permute.xlu0 %584
    %588 = vset.pattern.permute.xlu0 0
    %589 = vperm.xlu0 %588, %v571
    %v590 = vpop.permute.xlu0 %589
    %v593 = vsel %vm265, %v564, 0
    %v596 = vsel %vm265, %v565, 0
    %v599 = vsel %vm265, %v566, 0
    %v602 = vsel %vm265, %v567, 0
    %604 = vmatprep.subr.mxu0 0.0
    %605 = vmatpush1.msra.mxu0 0.0
    %606 = vmatprep.subr.mxu0 0.0
    %607 = vmatpush1.msra.mxu0 0.0
    %608 = vmatprep.subr.mxu0 0.0
    %609 = vmatpush1.msra.mxu0 0.0
    %610 = vmatprep.subr.mxu0 0.0
    %611 = vmatpush1.msra.mxu0 0.0
    %612 = vmatprep.subr.mxu0 0.0
    %613 = vmatpush1.msra.mxu0 0.0
    %614 = vmatprep.subr.mxu0 0.0
    %615 = vmatpush1.msra.mxu0 0.0
    %616 = vmatprep.subr.mxu0 0.0
    %617 = vmatpush1.msra.mxu0 0.0
    %618 = vmatprep.subr.mxu0 0.0
    %619 = vmatpush1.msra.mxu0 0.0
    %620 = vmatprep.subr.mxu0 0.0
    %621 = vmatpush1.msra.mxu0 %v563
    %622 = vmatprep.subr.mxu0 0.0
    %623 = vmatpush1.msra.mxu0 %v562
    %624 = vmatprep.subr.mxu0 0.0
    %625 = vmatpush1.msra.mxu0 %v561
    %626 = vmatprep.subr.mxu0 0.0
    %627 = vmatpush1.msra.mxu0 %v560
    %628 = vmatprep.subr.mxu0 0.0
    %629 = vmatpush1.msra.mxu0 %v559
    %630 = vmatprep.subr.mxu0 0.0
    %631 = vmatpush1.msra.mxu0 %v558
    %632 = vmatprep.subr.mxu0 0.0
    %633 = vmatpush1.msra.mxu0 %v557
    %634 = vmatprep.subr.mxu0 0.0
    %635 = vmatpush1.msra.mxu0 %v556
    %636 = vmatprep.subr.mxu0 0.0
    %637 = vmatpush2.msra.mxu0 0.0
    %638 = vmatprep.subr.mxu0 0.0
    %639 = vmatpush2.msra.mxu0 0.0
    %640 = vmatprep.subr.mxu0 0.0
    %641 = vmatpush2.msra.mxu0 0.0
    %642 = vmatprep.subr.mxu0 0.0
    %643 = vmatpush2.msra.mxu0 0.0
    %644 = vmatprep.subr.mxu0 0.0
    %645 = vmatpush2.msra.mxu0 0.0
    %646 = vmatprep.subr.mxu0 0.0
    %647 = vmatpush2.msra.mxu0 0.0
    %648 = vmatprep.subr.mxu0 0.0
    %649 = vmatpush2.msra.mxu0 0.0
    %650 = vmatprep.subr.mxu0 0.0
    %651 = vmatpush2.msra.mxu0 0.0
    %652 = vmatprep.subr.mxu0 0.0
    %653 = vmatpush2.msra.mxu0 0.0
    %654 = vmatprep.subr.mxu0 0.0
    %655 = vmatpush2.msra.mxu0 0.0
    %656 = vmatprep.subr.mxu0 0.0
    %657 = vmatpush2.msra.mxu0 0.0
    %658 = vmatprep.subr.mxu0 0.0
    %659 = vmatpush2.msra.mxu0 0.0
    %660 = vmatprep.subr.mxu0 0.0
    %661 = vmatpush2.msra.mxu0 0.0
    %662 = vmatprep.subr.mxu0 0.0
    %663 = vmatpush2.msra.mxu0 0.0
    %664 = vmatprep.subr.mxu0 0.0
    %665 = vmatpush2.msra.mxu0 0.0
    %666 = vmatprep.subr.mxu0 0.0
    %667 = vmatpush2.msra.mxu0 0.0
    %668 = vmatprep.mubr.f32.mxu0 0.0
    %669 = vmatmul.mubr.f32.gmra.mxu0 %v593
    %v670 = vpop.f32.mrf.mxu0
    %v671 = vadd.f32 %v575, %v670
    %v672 = vpop.f32.mrf.mxu0
    %673 = vmatprep.mubr.f32.mxu0 0.0
    %674 = vmatmul.mubr.f32.gmra.mxu0 %v596
    %v675 = vpop.f32.mrf.mxu0
    %v676 = vadd.f32 %v580, %v675
    %v677 = vpop.f32.mrf.mxu0
    %678 = vmatprep.mubr.f32.mxu0 0.0
    %679 = vmatmul.mubr.f32.gmra.mxu0 %v599
    %v680 = vpop.f32.mrf.mxu0
    %v681 = vadd.f32 %v585, %v680
    %v682 = vpop.f32.mrf.mxu0
    %683 = vmatprep.mubr.f32.mxu0 0.0
    %684 = vmatmul.mubr.f32.gmra.mxu0 %v602
    %v685 = vpop.f32.mrf.mxu0
    %v686 = vadd.f32 %v590, %v685
    %v687 = vpop.f32.mrf.mxu0
    %688 = vdwg.mxu0
    %689 = vst [vmem:[#allocation4] sm:$0xff] %v671
    %690 = vst [vmem:[#allocation4 + $0x8] sm:$0xff] %v676
    %691 = vst [vmem:[#allocation4 + $0x10] sm:$0xff] %v681
    %692 = vst [vmem:[#allocation4 + $0x18] sm:$0xff] %v686
    // Predicated region
    $region42: #{tpu_custom_call.1} parent=1 // pred_check
      _
    $region43: #{tpu_custom_call.1} parent=1 // pred_check_branch
      %694 = sbr.rel (0) target = $region45
    $region44: #{tpu_custom_call.1} parent=1 // pred_region
      %s696 = ssub.s32 512, 512
      %697 = vsyncadd [#allocation3], %s696
      %s698 = sshll.u32 [#allocation2], 4
      %s699 = int_to_ptr.vmem [resolvable:$true] %s698
      %704 = dma.vmem_to_hbm [thread:$0]  %s699, 512, %s10, [#allocation3], 128, 128, 8
    $region45: #{tpu_custom_call.1} parent=1 // pred_fallthru
      _
    // Predicated region
    $region46: #{tpu_custom_call.1} parent=1 // pred_check
      _
    $region47: #{tpu_custom_call.1} parent=1 // pred_check_branch
      %706 = sbr.rel (0) target = $region49
    $region48: #{tpu_custom_call.1} parent=1 // pred_region
      %s708 = ssub.s32 512, 512
      %709 = vsyncadd [#allocation5], %s708
      %s710 = sshll.u32 [#allocation4], 4
      %s711 = int_to_ptr.vmem [resolvable:$true] %s710
      %716 = dma.vmem_to_hbm [thread:$0]  %s711, 512, %s11, [#allocation5], 128, 128, 8
    $region49: #{tpu_custom_call.1} parent=1 // pred_fallthru
      _
    // Predicated region
    $region50: #{tpu_custom_call.1} parent=1 // pred_check
      _
    $region51: #{tpu_custom_call.1} parent=1 // pred_check_branch
      %718 = sbr.rel (0) target = $region53
    $region52: #{tpu_custom_call.1} parent=1 // pred_region
      %719 = dma.done [#allocation3], 512
    $region53: #{tpu_custom_call.1} parent=1 // pred_fallthru
      _
    // Predicated region
    $region54: #{tpu_custom_call.1} parent=1 // pred_check
      _
    $region55: #{tpu_custom_call.1} parent=1 // pred_check_branch
      %721 = sbr.rel (0) target = $region57
    $region56: #{tpu_custom_call.1} parent=1 // pred_region
      %722 = dma.done [#allocation5], 512
    $region57: #{tpu_custom_call.1} parent=1 // pred_fallthru
      _
    %723 = vsyncpa [#allocation3], 1
    %724 = vsyncpa [#allocation5], 1

</llo_original>
